<compile_context>
chip_gen: v6e
topology: v6e:2x2x1
jax: 0.10.0
libtpu: 0.0.40
codegen_flags: <defaults>
</compile_context>

<pallas_src>
import functools

import jax
import jax.numpy as jnp
from jax.experimental import pallas as pl
from jax.experimental.pallas import tpu as pltpu

_LANE = 128          # TPU vreg lane width
_SUBLANE = 8         # TPU vreg sublane width (f32)
_MAX_BATCH_TILE = 512  # rows per grid step; bounds VMEM on all generations


def _round_up(x, m):
    return ((x + m - 1) // m) * m


def _mlp_kernel(x_ref, w1_ref, b1_ref, w2_ref, b2_ref, out_ref):
    x = x_ref[...]                                   # (TB, obs)  f32
    batch = x.shape[0]
    obs_size = x.shape[1]
    hidden = w1_ref.shape[1]

    # ---- Layer 1 on the VPU -------------------------------------------------
    # K = obs_size is tiny (4 for CartPole): an MXU pass would be >96% padding
    # plus fill/drain latency.  Instead: obs_size unrolled broadcast-FMAs on
    # (TB, hidden) tiles.  Bias broadcast doubles as the accumulator init and
    # is hoisted out of the unrolled loop.
    h = jnp.broadcast_to(b1_ref[...], (batch, hidden))
    for k in range(obs_size):                        # static unroll
        h = h + x[:, k:k + 1] * w1_ref[k:k + 1, :]   # (TB,1)*(1,H) -> (TB,H)
    h = jnp.maximum(h, 0.0)                          # ReLU

    # ---- Layer 2 on the MXU -------------------------------------------------
    # hidden x n_pad GEMM; n_pad is a multiple of 128 (padded once at init),
    # so the store below is a lane-dense unmasked vst.
    o = jnp.dot(h, w2_ref[...], preferred_element_type=jnp.float32)
    out_ref[...] = (o + b2_ref[...]).astype(out_ref.dtype)


def prepare_params(w1, b1, w2, b2):
    """Pad layer-2 params to the lane width ONCE.

    Keep the returned (w2_p, b2_p) stored in this padded layout permanently
    (re-run after each optimizer step) so net_forward never pads weights.
    Returns (w1, b1, w2_p, b2_p, n_actions).
    """
    _, n_actions = w2.shape
    n_pad = _round_up(n_actions, _LANE)
    if n_pad != n_actions:
        w2 = jnp.pad(w2, ((0, 0), (0, n_pad - n_actions)))
        b2 = jnp.pad(b2, ((0, 0), (0, n_pad - n_actions)))
    return w1, b1, w2, b2, n_actions


@functools.partial(jax.jit, static_argnums=(5,))
def net_forward(x, w1, b1, w2_p, b2_p, n_actions):
    """Forward pass of Net: Linear -> ReLU -> Linear.

    x:    (B, obs_size)       float32  -- stack the whole CE/rollout batch;
                                          one call per batch, never per step.
    w1:   (obs_size, hidden)  float32  (transposed vs. PyTorch storage)
    b1:   (1, hidden)         float32
    w2_p: (hidden, n_pad)     float32  (lane-padded once by prepare_params)
    b2_p: (1, n_pad)          float32
    n_actions: python int (static)
    returns: (B, n_actions)   float32
    """
    batch, obs_size = x.shape
    hidden, n_pad = w2_p.shape

    # Batch tile: multiple of 8 (sublane), capped so per-step VMEM stays tiny
    # (~2*(x_tile + out_tile) + h + weights << scoped-VMEM default on v5e's
    # 16 MiB and v7x's 32 MiB).  Small batches -> one grid step.
    b8 = _round_up(batch, _SUBLANE)
    tb = min(_MAX_BATCH_TILE, b8)
    b_pad = _round_up(batch, tb)
    grid = (b_pad // tb,)

    x_p = x if b_pad == batch else jnp.pad(x, ((0, b_pad - batch), (0, 0)))

    out = pl.pallas_call(
        _mlp_kernel,
        out_shape=jax.ShapeDtypeStruct((b_pad, n_pad), jnp.float32),
        grid=grid,
        in_specs=[
            pl.BlockSpec((tb, obs_size), lambda i: (i, 0)),     # x: batch-tiled
            pl.BlockSpec((obs_size, hidden), lambda i: (0, 0)),  # w1: resident
            pl.BlockSpec((1, hidden), lambda i: (0, 0)),         # b1: resident
            pl.BlockSpec((hidden, n_pad), lambda i: (0, 0)),     # w2: resident
            pl.BlockSpec((1, n_pad), lambda i: (0, 0)),          # b2: resident
        ],
        out_specs=pl.BlockSpec((tb, n_pad), lambda i: (i, 0)),
        compiler_params=pltpu.CompilerParams(
            # Independent batch tiles: shard across v7x's 2 TensorCores.
            dimension_semantics=("parallel",)),
    )(x_p, w1, b1, w2_p, b2_p)

    # Slice padding off.  If downstream consumes the padded logits directly
    # (softmax/argmax over columns [0, n_actions)), drop this slice.
    return out[:batch, :n_actions]


def init_params(key, obs_size, hidden_size, n_actions):
    """Deterministic init mimicking nn.Linear default (U[-1/sqrt(fan_in), +])."""
    k1, k2, k3, k4 = jax.random.split(key, 4)
    bound1 = 1.0 / jnp.sqrt(obs_size)
    bound2 = 1.0 / jnp.sqrt(hidden_size)
    w1 = jax.random.uniform(k1, (obs_size, hidden_size), jnp.float32, -bound1, bound1)
    b1 = jax.random.uniform(k2, (1, hidden_size), jnp.float32, -bound1, bound1)
    w2 = jax.random.uniform(k3, (hidden_size, n_actions), jnp.float32, -bound2, bound2)
    b2 = jax.random.uniform(k4, (1, n_actions), jnp.float32, -bound2, bound2)
    return w1, b1, w2, b2


if __name__ == "__main__":
    # CartPole-sized problem: obs_size=4, hidden=128, n_actions=2.
    # BATCH represents a whole CE-method batch of stacked observations,
    # processed in ONE pallas_call.
    OBS_SIZE, HIDDEN_SIZE, N_ACTIONS, BATCH = 4, 128, 2, 16

    key = jax.random.PRNGKey(0)
    kx, kp = jax.random.split(key)
    x = jax.random.normal(kx, (BATCH, OBS_SIZE), jnp.float32)
    w1, b1, w2, b2 = init_params(kp, OBS_SIZE, HIDDEN_SIZE, N_ACTIONS)

    # Pad the layer-2 params to lane width ONCE (kept in this layout).
    w1_s, b1_s, w2_p, b2_p, n_act = prepare_params(w1, b1, w2, b2)

    out = net_forward(x, w1_s, b1_s, w2_p, b2_p, n_act)
    out = jax.block_until_ready(out)

    # Pure-JAX reference (same math as the PyTorch module).
    ref = jnp.maximum(x @ w1 + b1, 0.0) @ w2 + b2
    assert out.shape == (BATCH, N_ACTIONS)
    assert jnp.allclose(out, ref, atol=1e-5, rtol=1e-5)

    print("KERNEL_OK")
</pallas_src>

<mosaic_0001>
module attributes {stable_mosaic.version = 11 : i64} {
  func.func @_mlp_kernel(%arg0: i32, %arg1: memref<16x4xf32, #tpu.memory_space<vmem>>, %arg2: memref<4x128xf32, #tpu.memory_space<vmem>>, %arg3: memref<1x128xf32, #tpu.memory_space<vmem>>, %arg4: memref<128x128xf32, #tpu.memory_space<vmem>>, %arg5: memref<1x128xf32, #tpu.memory_space<vmem>>, %arg6: memref<16x128xf32, #tpu.memory_space<vmem>>) attributes {dimension_semantics = [#tpu.dimension_semantics<parallel>], iteration_bounds = array<i64: 1>, scalar_prefetch = 0 : i64, scratch_operands = 0 : i64, tpu.core_type = #tpu.core_type<tc>, window_params = [{transform_indices = @transform_0, window_bounds = array<i64: 16, 4>}, {pipeline_mode = #tpu.pipeline_mode<synchronous>, transform_indices = @transform_1, window_bounds = array<i64: 4, 128>}, {pipeline_mode = #tpu.pipeline_mode<synchronous>, transform_indices = @transform_2, window_bounds = array<i64: 1, 128>}, {pipeline_mode = #tpu.pipeline_mode<synchronous>, transform_indices = @transform_3, window_bounds = array<i64: 128, 128>}, {pipeline_mode = #tpu.pipeline_mode<synchronous>, transform_indices = @transform_4, window_bounds = array<i64: 1, 128>}, {transform_indices = @transform_5, window_bounds = array<i64: 16, 128>}]} {
    %c0 = arith.constant 0 : index
    %c0_0 = arith.constant 0 : index
    %0 = vector.load %arg1[%c0, %c0_0] : memref<16x4xf32, #tpu.memory_space<vmem>>, vector<16x4xf32>
    %c0_1 = arith.constant 0 : index
    %c0_2 = arith.constant 0 : index
    %1 = vector.load %arg3[%c0_1, %c0_2] : memref<1x128xf32, #tpu.memory_space<vmem>>, vector<1x128xf32>
    %2 = vector.shape_cast %1 : vector<1x128xf32> to vector<1x128xf32>
    %3 = vector.broadcast %2 : vector<1x128xf32> to vector<16x128xf32>
    %4 = vector.extract_strided_slice %0 {offsets = [0, 0], sizes = [16, 1], strides = [1, 1]} : vector<16x4xf32> to vector<16x1xf32>
    %c0_3 = arith.constant 0 : index
    %c0_4 = arith.constant 0 : index
    %5 = vector.load %arg2[%c0_3, %c0_4] : memref<4x128xf32, #tpu.memory_space<vmem>>, vector<1x128xf32>
    %6 = vector.broadcast %4 : vector<16x1xf32> to vector<16x128xf32>
    %7 = vector.broadcast %5 : vector<1x128xf32> to vector<16x128xf32>
    %8 = arith.mulf %6, %7 : vector<16x128xf32>
    %9 = arith.addf %3, %8 : vector<16x128xf32>
    %10 = vector.extract_strided_slice %0 {offsets = [0, 1], sizes = [16, 1], strides = [1, 1]} : vector<16x4xf32> to vector<16x1xf32>
    %c1 = arith.constant 1 : index
    %c0_5 = arith.constant 0 : index
    %11 = vector.load %arg2[%c1, %c0_5] : memref<4x128xf32, #tpu.memory_space<vmem>>, vector<1x128xf32>
    %12 = vector.broadcast %10 : vector<16x1xf32> to vector<16x128xf32>
    %13 = vector.broadcast %11 : vector<1x128xf32> to vector<16x128xf32>
    %14 = arith.mulf %12, %13 : vector<16x128xf32>
    %15 = arith.addf %9, %14 : vector<16x128xf32>
    %16 = vector.extract_strided_slice %0 {offsets = [0, 2], sizes = [16, 1], strides = [1, 1]} : vector<16x4xf32> to vector<16x1xf32>
    %c2 = arith.constant 2 : index
    %c0_6 = arith.constant 0 : index
    %17 = vector.load %arg2[%c2, %c0_6] : memref<4x128xf32, #tpu.memory_space<vmem>>, vector<1x128xf32>
    %18 = vector.broadcast %16 : vector<16x1xf32> to vector<16x128xf32>
    %19 = vector.broadcast %17 : vector<1x128xf32> to vector<16x128xf32>
    %20 = arith.mulf %18, %19 : vector<16x128xf32>
    %21 = arith.addf %15, %20 : vector<16x128xf32>
    %22 = vector.extract_strided_slice %0 {offsets = [0, 3], sizes = [16, 1], strides = [1, 1]} : vector<16x4xf32> to vector<16x1xf32>
    %c3 = arith.constant 3 : index
    %c0_7 = arith.constant 0 : index
    %23 = vector.load %arg2[%c3, %c0_7] : memref<4x128xf32, #tpu.memory_space<vmem>>, vector<1x128xf32>
    %24 = vector.broadcast %22 : vector<16x1xf32> to vector<16x128xf32>
    %25 = vector.broadcast %23 : vector<1x128xf32> to vector<16x128xf32>
    %26 = arith.mulf %24, %25 : vector<16x128xf32>
    %27 = arith.addf %21, %26 : vector<16x128xf32>
    %cst = arith.constant 0.000000e+00 : f32
    %28 = vector.broadcast %cst : f32 to vector<16x128xf32>
    %29 = arith.maximumf %27, %28 : vector<16x128xf32>
    %c0_8 = arith.constant 0 : index
    %c0_9 = arith.constant 0 : index
    %30 = vector.load %arg4[%c0_8, %c0_9] : memref<128x128xf32, #tpu.memory_space<vmem>>, vector<128x128xf32>
    %cst_10 = arith.constant dense<0.000000e+00> : vector<16x128xf32>
    %31 = tpu.matmul %29, %30, %cst_10 {dimension_numbers = #tpu.dot_dimension_numbers<[1], [0], [0], [1], [0, 0, 1, 1], [], []>} : vector<16x128xf32>, vector<128x128xf32>, vector<16x128xf32> -> vector<16x128xf32>
    %c0_11 = arith.constant 0 : index
    %c0_12 = arith.constant 0 : index
    %32 = vector.load %arg5[%c0_11, %c0_12] : memref<1x128xf32, #tpu.memory_space<vmem>>, vector<1x128xf32>
    %33 = vector.broadcast %32 : vector<1x128xf32> to vector<16x128xf32>
    %34 = arith.addf %31, %33 : vector<16x128xf32>
    %c0_13 = arith.constant 0 : index
    %c0_14 = arith.constant 0 : index
    %35 = vector.load %arg6[%c0_13, %c0_14] : memref<16x128xf32, #tpu.memory_space<vmem>>, vector<16x128xf32>
    tpu.vector_store %arg6[%c0_13, %c0_14], %34 {strides = array<i32>} : memref<16x128xf32, #tpu.memory_space<vmem>>, vector<16x128xf32>,
    return
  }
  func.func @transform_0(%arg0: i32) -> (i32, i32) {
    %c0_i32 = arith.constant 0 : i32
    %c0_i32_0 = arith.constant 0 : i32
    return %arg0, %c0_i32 : i32, i32
  }
  func.func @transform_1(%arg0: i32) -> (i32, i32) {
    %c0_i32 = arith.constant 0 : i32
    %c0_i32_0 = arith.constant 0 : i32
    %c0_i32_1 = arith.constant 0 : i32
    return %c0_i32, %c0_i32_0 : i32, i32
  }
  func.func @transform_2(%arg0: i32) -> (i32, i32) {
    %c0_i32 = arith.constant 0 : i32
    %c0_i32_0 = arith.constant 0 : i32
    %c0_i32_1 = arith.constant 0 : i32
    return %c0_i32, %c0_i32_0 : i32, i32
  }
  func.func @transform_3(%arg0: i32) -> (i32, i32) {
    %c0_i32 = arith.constant 0 : i32
    %c0_i32_0 = arith.constant 0 : i32
    %c0_i32_1 = arith.constant 0 : i32
    return %c0_i32, %c0_i32_0 : i32, i32
  }
  func.func @transform_4(%arg0: i32) -> (i32, i32) {
    %c0_i32 = arith.constant 0 : i32
    %c0_i32_0 = arith.constant 0 : i32
    %c0_i32_1 = arith.constant 0 : i32
    return %c0_i32, %c0_i32_0 : i32, i32
  }
  func.func @transform_5(%arg0: i32) -> (i32, i32) {
    %c0_i32 = arith.constant 0 : i32
    %c0_i32_0 = arith.constant 0 : i32
    return %arg0, %c0_i32 : i32, i32
  }
}

</mosaic_0001>

<llo_original>
// kernel: net_forward.1
$region0: #{net_forward.1}
  #allocation0 [shape = 'u32[]', space=smem, size = 0x4, offset = 0x4, fixed_abs, tag = 'smem constant byte address 0x4 - core index']
  #allocation1 [shape = 'u32[144,128]{1,0:T(1,128)}', space=vmem, size = 0x12000, scoped, tag = 'internal scratch']
  %s0 = inlined_call_operand.vmem [shape: f32[16,4], index: 0, kind: input, shape index: {}]
  %s1 = inlined_call_operand.vmem [shape: f32[4,128], index: 1, kind: input, shape index: {}]
  %s2 = inlined_call_operand.vmem [shape: f32[1,128], index: 2, kind: input, shape index: {}]
  %s3 = inlined_call_operand.hbm [shape: f32[128,128], index: 3, kind: input, shape index: {}]
  %s4 = inlined_call_operand.vmem [shape: f32[1,128], index: 4, kind: input, shape index: {}]
  %s5 = inlined_call_operand.vmem [shape: f32[16,128], index: 5, kind: output, shape index: {}]
  %s6 = sld [smem:[#allocation0]]
  $region34: #{net_forward.1} parent=0
    _
  %s8 = ssub.s32 1, %s6
  %s9 = scalar_select 0, %s8, %s6
  $region1: #{net_forward.1} parent=0
    #allocation2 [shape = 'u8[65536]{0}', space=vmem, size = 0x10000, scoped, tag = 'input window, operand 3, single buffered']
    #allocation3 [shape = 's32[1]{0}', space=sflag, size = 0x4, scoped, tag = 'scoped memory for net_forward.1']
    %10 = vsyncpa [#allocation3], 0
    // Predicated region
    $region2: #{net_forward.1} parent=1 // pred_check
      _
    $region3: #{net_forward.1} parent=1 // pred_check_branch
      %12 = sbr.rel (0) target = $region5
    $region4: #{net_forward.1} parent=1 // pred_region
      _
    $region5: #{net_forward.1} parent=1 // pred_fallthru
      _
    // Predicated region
    $region6: #{net_forward.1} parent=1 // pred_check
      _
    $region7: #{net_forward.1} parent=1 // pred_check_branch
      %14 = sbr.rel (0) target = $region9
    $region8: #{net_forward.1} parent=1 // pred_region
      _
    $region9: #{net_forward.1} parent=1 // pred_fallthru
      _
    // Predicated region
    $region10: #{net_forward.1} parent=1 // pred_check
      _
    $region11: #{net_forward.1} parent=1 // pred_check_branch
      %16 = sbr.rel (0) target = $region13
    $region12: #{net_forward.1} parent=1 // pred_region
      _
    $region13: #{net_forward.1} parent=1 // pred_fallthru
      _
    // Predicated region
    $region14: #{net_forward.1} parent=1 // pred_check
      _
    $region15: #{net_forward.1} parent=1 // pred_check_branch
      %18 = sbr.rel (0) target = $region17
    $region16: #{net_forward.1} parent=1 // pred_region
      %s20 = ssub.s32 2048, 2048
      %21 = vsyncadd [#allocation3], %s20
      %s22 = sshll.u32 [#allocation2], 4
      %s23 = int_to_ptr.vmem [resolvable:$true] %s22
      %28 = dma.hbm_to_vmem [thread:$0]  %s3, 2048, %s23, [#allocation3], 128, 128, 8
    $region17: #{net_forward.1} parent=1 // pred_fallthru
      _
    // Predicated region
    $region18: #{net_forward.1} parent=1 // pred_check
      _
    $region19: #{net_forward.1} parent=1 // pred_check_branch
      %30 = sbr.rel (0) target = $region21
    $region20: #{net_forward.1} parent=1 // pred_region
      _
    $region21: #{net_forward.1} parent=1 // pred_fallthru
      _
    // Predicated region
    $region22: #{net_forward.1} parent=1 // pred_check
      _
    $region23: #{net_forward.1} parent=1 // pred_check_branch
      %32 = sbr.rel (0) target = $region25
    $region24: #{net_forward.1} parent=1 // pred_region
      %33 = dma.done [#allocation3], 2048
    $region25: #{net_forward.1} parent=1 // pred_fallthru
      _
    %v34 = vld [vmem:[%s0] sm:$0xff]
    %v35 = vld [vmem:[%s0 + $0x8] sm:$0xff]
    %v36 = vld [vmem:[%s2] sm:$0x1]
    %v38 = vlaneseq
    %v39 = vshrl.u32 %v38, 7
    %v40 = vsub.s32 0, %v39
    %v41 = vrot.slane %v36, %v40
    %v43 = vld [vmem:[%s1] sm:$0x1]
    %45 = vset.pattern.permute.xlu0 0
    %46 = vperm.xlu0 %45, %v34
    %v47 = vpop.permute.xlu0 %46
    %50 = vset.pattern.permute.xlu0 0
    %51 = vperm.xlu0 %50, %v35
    %v52 = vpop.permute.xlu0 %51
    %v54 = vlaneseq
    %v55 = vshrl.u32 %v54, 7
    %v56 = vsub.s32 0, %v55
    %v57 = vrot.slane %v43, %v56
    %v58 = vmul.f32 %v47, %v57
    %v59 = vmul.f32 %v52, %v57
    %v60 = vadd.f32 %v41, %v58
    %v61 = vadd.f32 %v41, %v59
    %v62 = vld [vmem:[%s1 + $0x1] sm:$0x1]
    %63 = vset.pattern.permute.xlu0 1
    %64 = vperm.xlu0 %63, %v34
    %v65 = vpop.permute.xlu0 %64
    %67 = vset.pattern.permute.xlu0 1
    %68 = vperm.xlu0 %67, %v35
    %v69 = vpop.permute.xlu0 %68
    %v71 = vlaneseq
    %v72 = vshrl.u32 %v71, 7
    %v73 = vsub.s32 0, %v72
    %v74 = vrot.slane %v62, %v73
    %v75 = vmul.f32 %v65, %v74
    %v76 = vmul.f32 %v69, %v74
    %v77 = vadd.f32 %v60, %v75
    %v78 = vadd.f32 %v61, %v76
    %v79 = vld [vmem:[%s1 + $0x2] sm:$0x1]
    %80 = vset.pattern.permute.xlu0 2
    %81 = vperm.xlu0 %80, %v34
    %v82 = vpop.permute.xlu0 %81
    %84 = vset.pattern.permute.xlu0 2
    %85 = vperm.xlu0 %84, %v35
    %v86 = vpop.permute.xlu0 %85
    %v88 = vlaneseq
    %v89 = vshrl.u32 %v88, 7
    %v90 = vsub.s32 0, %v89
    %v91 = vrot.slane %v79, %v90
    %v92 = vmul.f32 %v82, %v91
    %v93 = vmul.f32 %v86, %v91
    %v94 = vadd.f32 %v77, %v92
    %v95 = vadd.f32 %v78, %v93
    %v96 = vld [vmem:[%s1 + $0x3] sm:$0x1]
    %97 = vset.pattern.permute.xlu0 3
    %98 = vperm.xlu0 %97, %v34
    %v99 = vpop.permute.xlu0 %98
    %101 = vset.pattern.permute.xlu0 3
    %102 = vperm.xlu0 %101, %v35
    %v103 = vpop.permute.xlu0 %102
    %v105 = vlaneseq
    %v106 = vshrl.u32 %v105, 7
    %v107 = vsub.s32 0, %v106
    %v108 = vrot.slane %v96, %v107
    %v109 = vmul.f32 %v99, %v108
    %v110 = vmul.f32 %v103, %v108
    %v111 = vadd.f32 %v94, %v109
    %v112 = vadd.f32 %v95, %v110
    %v113 = vmax.f32 %v111, 0.0
    %v114 = vmax.f32 %v112, 0.0
    %v115 = vld [vmem:[#allocation2] sm:$0xff]
    %v116 = vld [vmem:[#allocation2 + $0x8] sm:$0xff]
    %v117 = vld [vmem:[#allocation2 + $0x10] sm:$0xff]
    %v118 = vld [vmem:[#allocation2 + $0x18] sm:$0xff]
    %v119 = vld [vmem:[#allocation2 + $0x20] sm:$0xff]
    %v120 = vld [vmem:[#allocation2 + $0x28] sm:$0xff]
    %v121 = vld [vmem:[#allocation2 + $0x30] sm:$0xff]
    %v122 = vld [vmem:[#allocation2 + $0x38] sm:$0xff]
    %v123 = vld [vmem:[#allocation2 + $0x40] sm:$0xff]
    %v124 = vld [vmem:[#allocation2 + $0x48] sm:$0xff]
    %v125 = vld [vmem:[#allocation2 + $0x50] sm:$0xff]
    %v126 = vld [vmem:[#allocation2 + $0x58] sm:$0xff]
    %v127 = vld [vmem:[#allocation2 + $0x60] sm:$0xff]
    %v128 = vld [vmem:[#allocation2 + $0x68] sm:$0xff]
    %v129 = vld [vmem:[#allocation2 + $0x70] sm:$0xff]
    %v130 = vld [vmem:[#allocation2 + $0x78] sm:$0xff]
    %v131 = vld [vmem:[%s4] sm:$0x1]
    %v133 = vlaneseq
    %v134 = vshrl.u32 %v133, 7
    %v135 = vsub.s32 0, %v134
    %v136 = vrot.slane %v131, %v135
    %138 = vmatprep.subr.mxu0 0.0
    %139 = vmatpush1.msra.mxu0 %v130
    %140 = vmatprep.subr.mxu0 0.0
    %141 = vmatpush1.msra.mxu0 %v129
    %142 = vmatprep.subr.mxu0 0.0
    %143 = vmatpush1.msra.mxu0 %v128
    %144 = vmatprep.subr.mxu0 0.0
    %145 = vmatpush1.msra.mxu0 %v127
    %146 = vmatprep.subr.mxu0 0.0
    %147 = vmatpush1.msra.mxu0 %v126
    %148 = vmatprep.subr.mxu0 0.0
    %149 = vmatpush1.msra.mxu0 %v125
    %150 = vmatprep.subr.mxu0 0.0
    %151 = vmatpush1.msra.mxu0 %v124
    %152 = vmatprep.subr.mxu0 0.0
    %153 = vmatpush1.msra.mxu0 %v123
    %154 = vmatprep.subr.mxu0 0.0
    %155 = vmatpush1.msra.mxu0 %v122
    %156 = vmatprep.subr.mxu0 0.0
    %157 = vmatpush1.msra.mxu0 %v121
    %158 = vmatprep.subr.mxu0 0.0
    %159 = vmatpush1.msra.mxu0 %v120
    %160 = vmatprep.subr.mxu0 0.0
    %161 = vmatpush1.msra.mxu0 %v119
    %162 = vmatprep.subr.mxu0 0.0
    %163 = vmatpush1.msra.mxu0 %v118
    %164 = vmatprep.subr.mxu0 0.0
    %165 = vmatpush1.msra.mxu0 %v117
    %166 = vmatprep.subr.mxu0 0.0
    %167 = vmatpush1.msra.mxu0 %v116
    %168 = vmatprep.subr.mxu0 0.0
    %169 = vmatpush1.msra.mxu0 %v115
    %170 = vmatprep.subr.mxu0 0.0
    %171 = vmatpush2.msra.mxu0 0.0
    %172 = vmatprep.subr.mxu0 0.0
    %173 = vmatpush2.msra.mxu0 0.0
    %174 = vmatprep.subr.mxu0 0.0
    %175 = vmatpush2.msra.mxu0 0.0
    %176 = vmatprep.subr.mxu0 0.0
    %177 = vmatpush2.msra.mxu0 0.0
    %178 = vmatprep.subr.mxu0 0.0
    %179 = vmatpush2.msra.mxu0 0.0
    %180 = vmatprep.subr.mxu0 0.0
    %181 = vmatpush2.msra.mxu0 0.0
    %182 = vmatprep.subr.mxu0 0.0
    %183 = vmatpush2.msra.mxu0 0.0
    %184 = vmatprep.subr.mxu0 0.0
    %185 = vmatpush2.msra.mxu0 0.0
    %186 = vmatprep.subr.mxu0 0.0
    %187 = vmatpush2.msra.mxu0 0.0
    %188 = vmatprep.subr.mxu0 0.0
    %189 = vmatpush2.msra.mxu0 0.0
    %190 = vmatprep.subr.mxu0 0.0
    %191 = vmatpush2.msra.mxu0 0.0
    %192 = vmatprep.subr.mxu0 0.0
    %193 = vmatpush2.msra.mxu0 0.0
    %194 = vmatprep.subr.mxu0 0.0
    %195 = vmatpush2.msra.mxu0 0.0
    %196 = vmatprep.subr.mxu0 0.0
    %197 = vmatpush2.msra.mxu0 0.0
    %198 = vmatprep.subr.mxu0 0.0
    %199 = vmatpush2.msra.mxu0 0.0
    %200 = vmatprep.subr.mxu0 0.0
    %201 = vmatpush2.msra.mxu0 0.0
    %202 = vmatprep.mubr.f32.mxu0 0.0
    %203 = vmatmul.mubr.f32.gmra.mxu0 %v113
    %v204 = vpop.f32.mrf.mxu0
    %v205 = vadd.f32 %v136, %v204
    %v206 = vpop.f32.mrf.mxu0
    %207 = vmatprep.mubr.f32.mxu0 0.0
    %208 = vmatmul.mubr.f32.gmra.mxu0 %v114
    %v209 = vpop.f32.mrf.mxu0
    %v210 = vadd.f32 %v136, %v209
    %v211 = vpop.f32.mrf.mxu0
    %212 = vdwg.mxu0
    %213 = vst [vmem:[%s5] sm:$0xff] %v205
    %214 = vst [vmem:[%s5 + $0x8] sm:$0xff] %v210
    // Predicated region
    $region26: #{net_forward.1} parent=1 // pred_check
      _
    $region27: #{net_forward.1} parent=1 // pred_check_branch
      %216 = sbr.rel (0) target = $region29
    $region28: #{net_forward.1} parent=1 // pred_region
      _
    $region29: #{net_forward.1} parent=1 // pred_fallthru
      _
    // Predicated region
    $region30: #{net_forward.1} parent=1 // pred_check
      _
    $region31: #{net_forward.1} parent=1 // pred_check_branch
      %218 = sbr.rel (0) target = $region33
    $region32: #{net_forward.1} parent=1 // pred_region
      _
    $region33: #{net_forward.1} parent=1 // pred_fallthru
      _
    %219 = vsyncpa [#allocation3], 1

</llo_original>
